<compile_context>
chip_gen: v7x
topology: tpu7x:2x2x1
jax: 0.10.0
libtpu: 0.0.40
codegen_flags: <defaults>
</compile_context>

<pallas_src>
import jax
import jax.numpy as jnp
from jax.experimental import pallas as pl
from jax.experimental.pallas import tpu as pltpu


def fused_affine_kernel(x_ref, w_ref, b_ref, o_ref):
    # x_ref: (tm, Dk) f32 batch tile; w_ref: (Dk, P) f32 folded (block-diagonal) weight;
    # b_ref: (1, 1) f32 scalar bias in SMEM; o_ref: (tm, P) f32.
    acc = jnp.dot(x_ref[...], w_ref[...], preferred_element_type=jnp.float32)
    # NOTE: with P-row packing the output block is (tm, P); stores are still lane-masked,
    # but the output is <4% of HBM traffic after fusion, so we skip the in-kernel
    # (tm, P) -> (tm*P//128, 128) relayout that full lane-density would require.
    o_ref[...] = acc + b_ref[0, 0]


def fold_params(params):
    """Fold the 5 affine layers into one (D, 1) weight and (1, 1) bias (exact in f32)."""
    w_eff, b_eff = params[0]
    for w_t, b in params[1:]:
        w_eff = w_eff @ w_t
        b_eff = b_eff @ w_t + b
    return w_eff, b_eff


def _pick_tile_rows(n_rows, row_bytes, target_bytes):
    """Rows per grid step: ~target_bytes of x per step, >=2 steps, sublane-aligned."""
    if n_rows <= 8:
        return n_rows                         # single block equal to the full array dim
    tm = min(max(target_bytes // row_bytes, 8), n_rows)
    tm = min(tm, -(-n_rows // 2))             # >= 2 grid steps (v7x 2-TC sharding)
    tm = max(8, (tm // 8) * 8)                # sublane multiple, stays <= n_rows
    return tm


def linear_model_forward(x, params, *, target_tile_bytes=2 << 20):
    """x: (B, D) float32. params: list of (W_t, b) with W_t: (in, out), b: (1, out)."""
    B, D = x.shape
    w_eff, b_eff = fold_params(params)        # (D, 1) f32, (1, 1) f32

    # Lane packing: fold P batch rows into one 128-lane row when shapes permit.
    # The x reshape is a free bitcast for a contiguous row-major f32 array.
    P = 128 // D if (D <= 128 and 128 % D == 0) else 1
    if P > 1 and B % P == 0:
        x_k = x.reshape(B // P, P * D)
        w_k = jnp.kron(jnp.eye(P, dtype=w_eff.dtype), w_eff)   # block-diag (P*D, P)
    else:
        P = 1
        x_k = x
        w_k = w_eff

    rows, dk = x_k.shape
    tm = _pick_tile_rows(rows, dk * 4, target_tile_bytes)
    grid = (pl.cdiv(rows, tm),)

    out = pl.pallas_call(
        fused_affine_kernel,
        out_shape=jax.ShapeDtypeStruct((rows, P), jnp.float32),
        grid=grid,
        in_specs=[
            pl.BlockSpec((tm, dk), lambda i: (i, 0)),           # pipelined x tile
            pl.BlockSpec((dk, P), lambda i: (0, 0)),            # VMEM-resident weight
            pl.BlockSpec(memory_space=pltpu.MemorySpace.SMEM),  # scalar bias
        ],
        out_specs=pl.BlockSpec((tm, P), lambda i: (i, 0)),
        compiler_params=pltpu.CompilerParams(
            dimension_semantics=("parallel",),                  # megacore sharding on v7x
            vmem_limit_bytes=32 * 1024 * 1024,                  # above v5e's 16 MiB default
        ),
        cost_estimate=pl.CostEstimate(
            flops=2 * rows * dk * P,
            transcendentals=0,
            bytes_accessed=x_k.size * 4 + w_k.size * 4 + rows * P * 4,
        ),
    )(x_k, w_k, b_eff)
    return out.reshape(B, 1)


def init_params(key, num_column):
    """Deterministic init matching the layer shapes of linear_model(num_column)."""
    d = num_column - 2
    assert d // 8 >= 1, "num_column too small: last hidden width collapses to 0"
    dims = [d, d, d // 2, d // 4, d // 8, 1]
    params = []
    for i in range(5):
        fan_in, fan_out = dims[i], dims[i + 1]
        key, kw, kb = jax.random.split(key, 3)
        bound = 1.0 / jnp.sqrt(jnp.float32(fan_in))
        # PyTorch stores W as (out, in); we keep the transposed (in, out) layout.
        w_t = jax.random.uniform(kw, (fan_in, fan_out), jnp.float32, -bound, bound)
        b = jax.random.uniform(kb, (1, fan_out), jnp.float32, -bound, bound)
        params.append((w_t, b))
    return params


def reference_forward(x, params):
    h = x
    for w_t, b in params:
        h = h @ w_t + b
    return h


if __name__ == "__main__":
    key = jax.random.PRNGKey(0)
    num_column = 34                    # feature dim D = 32; layers 32->32->16->8->4->1
    k_small, k_par, k_big, k_odd = jax.random.split(key, 4)
    params = init_params(k_par, num_column)
    fwd = jax.jit(linear_model_forward)

    # Small shape consistent with the module (packed lane-dense path, single block).
    x_small = jax.random.normal(k_small, (8, num_column - 2), jnp.float32)
    out_small = jax.block_until_ready(fwd(x_small, params))
    ref_small = reference_forward(x_small, params)
    assert out_small.shape == (8, 1)
    assert jnp.allclose(out_small, ref_small, atol=2e-2, rtol=2e-2)

    # Larger batch exercising the multi-step ragged grid + pipelining (packed path).
    x_big = jax.random.normal(k_big, (300, num_column - 2), jnp.float32)
    out_big = jax.block_until_ready(fwd(x_big, params))
    ref_big = reference_forward(x_big, params)
    assert out_big.shape == (300, 1)
    assert jnp.allclose(out_big, ref_big, atol=2e-2, rtol=2e-2)

    # Batch not divisible by the packing factor -> unpacked fallback + ragged tail.
    x_odd = jax.random.normal(k_odd, (301, num_column - 2), jnp.float32)
    out_odd = jax.block_until_ready(fwd(x_odd, params))
    ref_odd = reference_forward(x_odd, params)
    assert out_odd.shape == (301, 1)
    assert jnp.allclose(out_odd, ref_odd, atol=2e-2, rtol=2e-2)

    print("KERNEL_OK")
</pallas_src>

<mosaic_0001>
module attributes {stable_mosaic.version = 11 : i64} {
  func.func @fused_affine_kernel(%arg0: i32, %arg1: memref<2x128xf32, #tpu.memory_space<vmem>>, %arg2: memref<128x4xf32, #tpu.memory_space<vmem>>, %arg3: memref<1x1xf32, #tpu.memory_space<smem>>, %arg4: memref<2x4xf32, #tpu.memory_space<vmem>>) attributes {dimension_semantics = [#tpu.dimension_semantics<parallel>], iteration_bounds = array<i64: 1>, scalar_prefetch = 0 : i64, scratch_operands = 0 : i64, tpu.core_type = #tpu.core_type<tc>, window_params = [{transform_indices = @transform_0, window_bounds = array<i64: 2, 128>}, {pipeline_mode = #tpu.pipeline_mode<synchronous>, transform_indices = @transform_1, window_bounds = array<i64: 128, 4>}, {transform_indices = @transform_2, window_bounds = array<i64: 1, 1>}, {transform_indices = @transform_3, window_bounds = array<i64: 2, 4>}]} {
    %c0 = arith.constant 0 : index
    %c0_0 = arith.constant 0 : index
    %0 = vector.load %arg1[%c0, %c0_0] : memref<2x128xf32, #tpu.memory_space<vmem>>, vector<2x128xf32>
    %c0_1 = arith.constant 0 : index
    %c0_2 = arith.constant 0 : index
    %1 = vector.load %arg2[%c0_1, %c0_2] : memref<128x4xf32, #tpu.memory_space<vmem>>, vector<128x4xf32>
    %cst = arith.constant dense<0.000000e+00> : vector<2x4xf32>
    %2 = tpu.matmul %0, %1, %cst {dimension_numbers = #tpu.dot_dimension_numbers<[1], [0], [0], [1], [0, 0, 1, 1], [], []>} : vector<2x128xf32>, vector<128x4xf32>, vector<2x4xf32> -> vector<2x4xf32>
    %c0_3 = arith.constant 0 : index
    %c0_4 = arith.constant 0 : index
    %3 = memref.load %arg3[%c0_3, %c0_4] : memref<1x1xf32, #tpu.memory_space<smem>>
    %4 = vector.broadcast %3 : f32 to vector<2x4xf32>
    %5 = arith.addf %2, %4 : vector<2x4xf32>
    %c0_5 = arith.constant 0 : index
    %c0_6 = arith.constant 0 : index
    %6 = vector.load %arg4[%c0_5, %c0_6] : memref<2x4xf32, #tpu.memory_space<vmem>>, vector<2x4xf32>
    tpu.vector_store %arg4[%c0_5, %c0_6], %5 {strides = array<i32>} : memref<2x4xf32, #tpu.memory_space<vmem>>, vector<2x4xf32>,
    return
  }
  func.func @transform_0(%arg0: i32) -> (i32, i32) {
    %c0_i32 = arith.constant 0 : i32
    %c0_i32_0 = arith.constant 0 : i32
    return %arg0, %c0_i32 : i32, i32
  }
  func.func @transform_1(%arg0: i32) -> (i32, i32) {
    %c0_i32 = arith.constant 0 : i32
    %c0_i32_0 = arith.constant 0 : i32
    %c0_i32_1 = arith.constant 0 : i32
    return %c0_i32, %c0_i32_0 : i32, i32
  }
  func.func @transform_2(%arg0: i32) -> (i32, i32) {
    %c0_i32 = arith.constant 0 : i32
    %c0_i32_0 = arith.constant 0 : i32
    %c0_i32_1 = arith.constant 0 : i32
    return %c0_i32, %c0_i32_0 : i32, i32
  }
  func.func @transform_3(%arg0: i32) -> (i32, i32) {
    %c0_i32 = arith.constant 0 : i32
    %c0_i32_0 = arith.constant 0 : i32
    return %arg0, %c0_i32 : i32, i32
  }
}

</mosaic_0001>

<llo_original>
// kernel: linear_model_forward.1
$region0: #{linear_model_forward.1}
  #allocation0 [shape = 'u32[]', space=smem, size = 0x4, offset = 0x4, fixed_abs, tag = 'smem constant byte address 0x4 - core index']
  #allocation1 [shape = 'u32[144,128]{1,0:T(1,128)}', space=vmem, size = 0x12000, scoped, tag = 'internal scratch']
  #allocation2 [shape = 'f32[1,1]{1,0:T(1,128)S(6)}', space=smem, size = 0x200, scoped, tag = 'scoped memory for linear_model_forward.1']
  %s0 = inlined_call_operand.vmem [shape: f32[2,128], index: 0, kind: input, shape index: {}]
  %s1 = inlined_call_operand.vmem [shape: f32[128,4], index: 1, kind: input, shape index: {}]
  %s2 = inlined_call_operand.<no memory space> [shape: f32[1,1], index: 2, kind: input, shape index: {}]
  %s3 = inlined_call_operand.vmem [shape: f32[2,4], index: 3, kind: output, shape index: {}]
  %s4 = sld [smem:[#allocation0]]
  $region22: #{linear_model_forward.1} parent=0
    _
  %s6 = ssub.s32 1, %s4
  %s7 = scalar_select 0, %s6, %s4
  %8 = sst [smem:[#allocation2]] %s2
  // Predicated region
  $region2: #{linear_model_forward.1} parent=0 // pred_check
    _
  $region3: #{linear_model_forward.1} parent=0 // pred_check_branch
    %10 = sbr.rel (0) target = $region5
  $region4: #{linear_model_forward.1} parent=0 // pred_region
    _
  $region5: #{linear_model_forward.1} parent=0 // pred_fallthru
    _
  // Predicated region
  $region6: #{linear_model_forward.1} parent=0 // pred_check
    _
  $region7: #{linear_model_forward.1} parent=0 // pred_check_branch
    %12 = sbr.rel (0) target = $region9
  $region8: #{linear_model_forward.1} parent=0 // pred_region
    _
  $region9: #{linear_model_forward.1} parent=0 // pred_fallthru
    _
  // Predicated region
  $region10: #{linear_model_forward.1} parent=0 // pred_check
    _
  $region11: #{linear_model_forward.1} parent=0 // pred_check_branch
    %14 = sbr.rel (0) target = $region13
  $region12: #{linear_model_forward.1} parent=0 // pred_region
    _
  $region13: #{linear_model_forward.1} parent=0 // pred_fallthru
    _
  %v15 = vld [vmem:[%s0] sm:$0x3]
  %v16 = vld [vmem:[%s1] sm:$0xff]
  %v17 = vld [vmem:[%s1 + $0x8] sm:$0xff]
  %v18 = vld [vmem:[%s1 + $0x10] sm:$0xff]
  %v19 = vld [vmem:[%s1 + $0x18] sm:$0xff]
  %v20 = vld [vmem:[%s1 + $0x20] sm:$0xff]
  %v21 = vld [vmem:[%s1 + $0x28] sm:$0xff]
  %v22 = vld [vmem:[%s1 + $0x30] sm:$0xff]
  %v23 = vld [vmem:[%s1 + $0x38] sm:$0xff]
  %v24 = vld [vmem:[%s1 + $0x40] sm:$0xff]
  %v25 = vld [vmem:[%s1 + $0x48] sm:$0xff]
  %v26 = vld [vmem:[%s1 + $0x50] sm:$0xff]
  %v27 = vld [vmem:[%s1 + $0x58] sm:$0xff]
  %v28 = vld [vmem:[%s1 + $0x60] sm:$0xff]
  %v29 = vld [vmem:[%s1 + $0x68] sm:$0xff]
  %v30 = vld [vmem:[%s1 + $0x70] sm:$0xff]
  %v31 = vld [vmem:[%s1 + $0x78] sm:$0xff]
  %s32 = sld [smem:[#allocation2]]
  %v33 = vstv %s32
  %34 = vmatprep.subr.mxu0 0.0
  %35 = vmatpush1.msra.mxu0 %v16
  %36 = vmatprep.subr.mxu0 0.0
  %37 = vmatpush1.msra.mxu0 %v17
  %38 = vmatprep.subr.mxu0 0.0
  %39 = vmatpush1.msra.mxu0 %v18
  %40 = vmatprep.subr.mxu0 0.0
  %41 = vmatpush1.msra.mxu0 %v19
  %42 = vmatprep.subr.mxu0 0.0
  %43 = vmatpush1.msra.mxu0 %v20
  %44 = vmatprep.subr.mxu0 0.0
  %45 = vmatpush1.msra.mxu0 %v21
  %46 = vmatprep.subr.mxu0 0.0
  %47 = vmatpush1.msra.mxu0 %v22
  %48 = vmatprep.subr.mxu0 0.0
  %49 = vmatpush1.msra.mxu0 %v23
  %50 = vmatprep.subr.mxu0 0.0
  %51 = vmatpush1.msra.mxu0 %v24
  %52 = vmatprep.subr.mxu0 0.0
  %53 = vmatpush1.msra.mxu0 %v25
  %54 = vmatprep.subr.mxu0 0.0
  %55 = vmatpush1.msra.mxu0 %v26
  %56 = vmatprep.subr.mxu0 0.0
  %57 = vmatpush1.msra.mxu0 %v27
  %58 = vmatprep.subr.mxu0 0.0
  %59 = vmatpush1.msra.mxu0 %v28
  %60 = vmatprep.subr.mxu0 0.0
  %61 = vmatpush1.msra.mxu0 %v29
  %62 = vmatprep.subr.mxu0 0.0
  %63 = vmatpush1.msra.mxu0 %v30
  %64 = vmatprep.subr.mxu0 0.0
  %65 = vmatpush1.msra.mxu0 %v31
  %66 = vmatprep.subr.mxu0 0.0
  %67 = vmatpush1.msra.mxu0 0.0
  %68 = vmatprep.subr.mxu0 0.0
  %69 = vmatpush1.msra.mxu0 0.0
  %70 = vmatprep.subr.mxu0 0.0
  %71 = vmatpush1.msra.mxu0 0.0
  %72 = vmatprep.subr.mxu0 0.0
  %73 = vmatpush1.msra.mxu0 0.0
  %74 = vmatprep.subr.mxu0 0.0
  %75 = vmatpush1.msra.mxu0 0.0
  %76 = vmatprep.subr.mxu0 0.0
  %77 = vmatpush1.msra.mxu0 0.0
  %78 = vmatprep.subr.mxu0 0.0
  %79 = vmatpush1.msra.mxu0 0.0
  %80 = vmatprep.subr.mxu0 0.0
  %81 = vmatpush1.msra.mxu0 0.0
  %82 = vmatprep.subr.mxu0 0.0
  %83 = vmatpush1.msra.mxu0 0.0
  %84 = vmatprep.subr.mxu0 0.0
  %85 = vmatpush1.msra.mxu0 0.0
  %86 = vmatprep.subr.mxu0 0.0
  %87 = vmatpush1.msra.mxu0 0.0
  %88 = vmatprep.subr.mxu0 0.0
  %89 = vmatpush1.msra.mxu0 0.0
  %90 = vmatprep.subr.mxu0 0.0
  %91 = vmatpush1.msra.mxu0 0.0
  %92 = vmatprep.subr.mxu0 0.0
  %93 = vmatpush1.msra.mxu0 0.0
  %94 = vmatprep.subr.mxu0 0.0
  %95 = vmatpush1.msra.mxu0 0.0
  %96 = vmatprep.subr.mxu0 0.0
  %97 = vmatpush1.msra.mxu0 0.0
  %98 = vmatprep.mubr.f32.mxu0 0.0
  %99 = vmatmul.mubr.f32.gmra.mrb[0].mxu0 %v15
  %v100 = vpop.f32.mrb[0].mxu0
  %v101 = vadd.f32 %v33, %v100
  %v102 = vpop.f32.mrb[0].mxu0
  %103 = vdwg.mxu0
  %vm104 = vcmask 25600
  %105 = vst.msk [vmem:[%s3] sm:$0x3] %vm104, %v101
  // Predicated region
  $region14: #{linear_model_forward.1} parent=0 // pred_check
    _
  $region15: #{linear_model_forward.1} parent=0 // pred_check_branch
    %107 = sbr.rel (0) target = $region17
  $region16: #{linear_model_forward.1} parent=0 // pred_region
    _
  $region17: #{linear_model_forward.1} parent=0 // pred_fallthru
    _
  // Predicated region
  $region18: #{linear_model_forward.1} parent=0 // pred_check
    _
  $region19: #{linear_model_forward.1} parent=0 // pred_check_branch
    %109 = sbr.rel (0) target = $region21
  $region20: #{linear_model_forward.1} parent=0 // pred_region
    _
  $region21: #{linear_model_forward.1} parent=0 // pred_fallthru
    _

</llo_original>
